<compile_context>
chip_gen: v5e
topology: v5e:2x2
jax: 0.10.0
libtpu: 0.0.40
codegen_flags: <defaults>
</compile_context>

<pallas_src>
import jax
import jax.numpy as jnp
import numpy as np
from jax.experimental import pallas as pl
from jax.experimental.pallas import tpu as pltpu


# ------------------------------- kernel ------------------------------------
def _make_prior_bce_kernel(total_b, vocab, dim, inner_steps):
    """Kernel factory; closes over the GLOBAL normalization constants."""
    inv_bv = 1.0 / (float(total_b) * float(vocab))
    inv_bd = 1.0 / (float(total_b) * float(dim))
    inv_b = 1.0 / float(total_b)

    def kernel(recon_ref, ltext_ref, lrec_ref, x_ref,
               mu_ref, lv_ref, pmu_ref, plv_ref, out_ref,
               acc_m, acc_t, acc_r, acc_k1, acc_k2, acc_w):
        i = pl.program_id(1)  # inner (accumulation) axis

        @pl.when(i == 0)
        def _init():
            acc_m[...] = jnp.zeros_like(acc_m)
            acc_t[...] = jnp.zeros_like(acc_t)
            acc_r[...] = jnp.zeros_like(acc_r)
            acc_k1[...] = jnp.zeros_like(acc_k1)
            acc_k2[...] = jnp.zeros_like(acc_k2)
            acc_w[...] = jnp.zeros_like(acc_w)

        # ---- cross-entropy partial sums: sum(z*x) - lse*sum(x) --------------
        x = x_ref[...].astype(jnp.float32)
        sum_x = jnp.sum(x, axis=1, keepdims=True)            # (TB, 1), shared

        def ce_partial(lref):
            logits = lref[...].astype(jnp.float32)
            m = jnp.max(logits, axis=1, keepdims=True)
            z = logits - m
            lse = jnp.log(jnp.sum(jnp.exp(z), axis=1, keepdims=True))
            row = jnp.sum(z * x, axis=1, keepdims=True) - lse * sum_x  # (TB,1)
            return jnp.sum(row, axis=0, keepdims=True)                 # (1, 1)

        acc_m[...] += ce_partial(recon_ref)
        acc_t[...] += ce_partial(ltext_ref)
        acc_r[...] += ce_partial(lrec_ref)

        # ---- latent partial sums (KLDs + diagonal Bures-Wasserstein) --------
        mu = mu_ref[...].astype(jnp.float32)
        lv = lv_ref[...].astype(jnp.float32)
        pmu = pmu_ref[...].astype(jnp.float32)
        plv = plv_ref[...].astype(jnp.float32)

        e1 = jnp.exp(0.5 * lv)          # sqrt of variance (one EUP pass each)
        e2 = jnp.exp(0.5 * plv)
        s1 = e1 * e1
        s2 = e2 * e2

        acc_k1[...] += jnp.sum(
            jnp.sum(1.0 + lv - mu * mu - s1, axis=1, keepdims=True),
            axis=0, keepdims=True)
        acc_k2[...] += jnp.sum(
            jnp.sum(1.0 + plv - pmu * pmu - s2, axis=1, keepdims=True),
            axis=0, keepdims=True)

        md = mu - pmu
        de = e1 - e2                    # (e1-e2)^2 == s1 + s2 - 2*sqrt(s1*s2)
        acc_w[...] += jnp.sum(
            jnp.sum(md * md + de * de, axis=1, keepdims=True),
            axis=0, keepdims=True)

        # ---- finalize (once per core): normalize by GLOBAL sizes & pack -----
        @pl.when(i == inner_steps - 1)
        def _finalize():
            bce_merged = -acc_m[...] * inv_bv
            bce_text = -acc_t[...] * inv_bv
            bce_rec = -acc_r[...] * inv_bv
            kld1 = (-0.5 * inv_bd) * acc_k1[...]
            kld2 = (-0.5 * inv_bd) * acc_k2[...]
            wass = acc_w[...] * inv_b

            rid = jax.lax.broadcasted_iota(jnp.int32, (8, 128), 0)
            zeros = jnp.zeros((8, 128), jnp.float32)
            out = jnp.where(rid == 0, bce_merged, zeros)
            out = out + jnp.where(rid == 1, bce_text, zeros)
            out = out + jnp.where(rid == 2, bce_rec, zeros)
            out = out + jnp.where(rid == 3, kld1, zeros)
            out = out + jnp.where(rid == 4, kld2, zeros)
            out = out + jnp.where(rid == 5, wass, zeros)
            out_ref[...] = out

    return kernel


# ------------------------------- wrapper ------------------------------------
def _round_up(x, m):
    return ((x + m - 1) // m) * m


def _vmem_capacity_bytes():
    try:
        return int(pltpu.get_tpu_info().vmem_capacity_bytes)
    except Exception:
        return 64 * 1024 * 1024  # conservative fallback (v7x per-core VMEM)


def _choose_tile_batch(vocab, dim, itemsize, vmem_budget_bytes):
    # 4 logit-sized + 4 latent-sized streams, double-buffered by the pipeline.
    bytes_per_row = (4 * vocab + 4 * dim) * itemsize
    tb = vmem_budget_bytes // (2 * bytes_per_row)
    tb = int(min(max(tb, 8), 1024))  # >=512 rows is already ~HBM roofline
    return max(8, (tb // 8) * 8)


def prior_bce(recon_x, logits_rec, logits_text, x, mu, logvar,
              prior_mu, prior_logvar, anneal=1.0, epsilon=1.0,
              regularization_type='none', tile_batch=None):
    """Pallas implementation of PriorBCE.forward."""
    B, V = recon_x.shape
    D = mu.shape[1]
    itemsize = max(jnp.dtype(recon_x.dtype).itemsize,
                   jnp.dtype(mu.dtype).itemsize)

    vmem_cap = _vmem_capacity_bytes()
    vmem_budget = vmem_cap // 2  # headroom for output, scratch, compiler temps

    if tile_batch is None:
        tb = _choose_tile_batch(V, D, itemsize, vmem_budget)
    else:
        tb = max(8, (int(tile_batch) // 8) * 8)
    tb = min(tb, _round_up(B, 8))

    num_tiles = -(-B // tb)
    num_cores = 2 if num_tiles >= 2 else 1   # v7x megacore split; harmless on 1-TC chips
    tiles_per_core = -(-num_tiles // num_cores)
    b_pad = num_cores * tiles_per_core * tb

    def pad_b(a):
        if a.shape[0] == b_pad:
            return a
        # zero-padded rows contribute exactly 0 to every partial sum
        return jnp.pad(a, ((0, b_pad - a.shape[0]), (0, 0)))

    recon_p = pad_b(recon_x)
    ltext_p = pad_b(logits_text)
    lrec_p = pad_b(logits_rec)
    x_p = pad_b(x)
    mu_p = pad_b(mu)
    lv_p = pad_b(logvar)
    pmu_p = pad_b(prior_mu)
    plv_p = pad_b(prior_logvar)

    kernel = _make_prior_bce_kernel(B, V, D, tiles_per_core)

    def row_map(c, i):
        return (c * tiles_per_core + i, 0)

    logits_spec = pl.BlockSpec((tb, V), row_map)
    lat_spec = pl.BlockSpec((tb, D), row_map)

    vmem_needed = 2 * tb * (4 * V + 4 * D) * itemsize + (1 << 20)
    vmem_limit = int(min(vmem_cap - (4 << 20), max(32 << 20, vmem_needed)))

    out = pl.pallas_call(
        kernel,
        grid=(num_cores, tiles_per_core),
        out_shape=jax.ShapeDtypeStruct((num_cores, 8, 128), jnp.float32),
        in_specs=[logits_spec, logits_spec, logits_spec, logits_spec,
                  lat_spec, lat_spec, lat_spec, lat_spec],
        out_specs=pl.BlockSpec((None, 8, 128), lambda c, i: (c, 0, 0)),
        scratch_shapes=[pltpu.VMEM((1, 1), jnp.float32)] * 6,
        compiler_params=pltpu.CompilerParams(
            dimension_semantics=("parallel", "arbitrary"),
            vmem_limit_bytes=vmem_limit),
    )(recon_p, ltext_p, lrec_p, x_p, mu_p, lv_p, pmu_p, plv_p)

    totals = jnp.sum(out, axis=0)  # combine per-core partial results
    bce_merged = totals[0, 0]
    bce_text = totals[1, 0]
    bce_rec = totals[2, 0]
    kld1 = totals[3, 0]
    kld2 = totals[4, 0]
    wass = totals[5, 0]

    bce = (bce_merged + bce_text + bce_rec) / 3.0
    l = bce + anneal / 2.0 * (kld1 + kld2)
    if regularization_type == 'OT':
        l = l + epsilon * wass
    return l, bce, wass, bce_rec, bce_text, bce_merged


# ----------------------------- pure-JAX reference ---------------------------
def _bures_wasserstein_ref(means1, covs1, means2, covs2):
    mean_diff = means1 - means2
    mean_dist_squared = jnp.sum(mean_diff ** 2, axis=1)
    sqrt_covs1 = jnp.linalg.cholesky(covs1)
    intermediate = jnp.matmul(sqrt_covs1, covs2)
    product_matrix = jnp.matmul(intermediate, jnp.swapaxes(sqrt_covs1, 1, 2))
    sqrt_middle = jnp.linalg.cholesky(product_matrix)
    trace_sqrt_middle = jnp.trace(sqrt_middle, axis1=-2, axis2=-1)
    trace_covs1 = jnp.trace(covs1, axis1=-2, axis2=-1)
    trace_covs2 = jnp.trace(covs2, axis1=-2, axis2=-1)
    trace_term = trace_covs1 + trace_covs2 - 2.0 * trace_sqrt_middle
    return mean_dist_squared + trace_term


def prior_bce_reference(recon_x, logits_rec, logits_text, x, mu, logvar,
                        prior_mu, prior_logvar, anneal=1.0, epsilon=1.0,
                        regularization_type='none'):
    def nll(logits):
        return -jnp.mean(jnp.mean(jax.nn.log_softmax(logits, axis=1) * x, axis=-1))

    bce_merged = nll(recon_x)
    bce_text = nll(logits_text)
    bce_rec = nll(logits_rec)
    bce = (bce_merged + bce_text + bce_rec) / 3.0

    kld1 = -0.5 * jnp.mean(jnp.mean(1.0 + logvar - mu ** 2 - jnp.exp(logvar), axis=1))
    kld2 = -0.5 * jnp.mean(jnp.mean(1.0 + prior_logvar - prior_mu ** 2
                                    - jnp.exp(prior_logvar), axis=1))

    sigma2_diag = jax.vmap(jnp.diag)(jnp.exp(logvar))
    sigma2_prior_diag = jax.vmap(jnp.diag)(jnp.exp(prior_logvar))
    wass = jnp.mean(_bures_wasserstein_ref(mu, sigma2_diag, prior_mu,
                                           sigma2_prior_diag))

    l = bce + anneal / 2.0 * (kld1 + kld2)
    if regularization_type == 'OT':
        l = l + epsilon * wass
    return l, bce, wass, bce_rec, bce_text, bce_merged


# --------------------------------- test --------------------------------------
if __name__ == "__main__":
    key = jax.random.PRNGKey(0)
    B, V, D = 26, 256, 128           # odd B exercises batch padding
    ks = jax.random.split(key, 8)

    recon_x = jax.random.normal(ks[0], (B, V), jnp.float32)
    logits_rec = jax.random.normal(ks[1], (B, V), jnp.float32)
    logits_text = jax.random.normal(ks[2], (B, V), jnp.float32)
    x = (jax.random.uniform(ks[3], (B, V)) < 0.3).astype(jnp.float32)
    mu = jax.random.normal(ks[4], (B, D), jnp.float32)
    logvar = 0.1 * jax.random.normal(ks[5], (B, D), jnp.float32)
    prior_mu = jax.random.normal(ks[6], (B, D), jnp.float32)
    prior_logvar = 0.1 * jax.random.normal(ks[7], (B, D), jnp.float32)

    refs = prior_bce_reference(recon_x, logits_rec, logits_text, x, mu, logvar,
                               prior_mu, prior_logvar, anneal=1.0, epsilon=1.0,
                               regularization_type='OT')

    # 1) auto tile size (single batch tile at this small shape)
    outs = prior_bce(recon_x, logits_rec, logits_text, x, mu, logvar,
                     prior_mu, prior_logvar, anneal=1.0, epsilon=1.0,
                     regularization_type='OT')
    outs = jax.block_until_ready(outs)
    for o, r in zip(outs, refs):
        np.testing.assert_allclose(np.asarray(o), np.asarray(r),
                                   rtol=2e-4, atol=2e-5)

    # 2) forced small tiles -> multi-step accumulation grid + 2-core split
    outs_t = prior_bce(recon_x, logits_rec, logits_text, x, mu, logvar,
                       prior_mu, prior_logvar, anneal=1.0, epsilon=1.0,
                       regularization_type='OT', tile_batch=8)
    outs_t = jax.block_until_ready(outs_t)
    for o, r in zip(outs_t, refs):
        np.testing.assert_allclose(np.asarray(o), np.asarray(r),
                                   rtol=2e-4, atol=2e-5)

    # 3) bf16 streaming inputs (halves HBM bytes); kernel upcasts to f32
    bf = lambda a: a.astype(jnp.bfloat16)
    f32 = lambda a: bf(a).astype(jnp.float32)
    refs_bf = prior_bce_reference(f32(recon_x), f32(logits_rec), f32(logits_text),
                                  f32(x), f32(mu), f32(logvar), f32(prior_mu),
                                  f32(prior_logvar), anneal=1.0, epsilon=1.0,
                                  regularization_type='OT')
    outs_bf = prior_bce(bf(recon_x), bf(logits_rec), bf(logits_text), bf(x),
                        bf(mu), bf(logvar), bf(prior_mu), bf(prior_logvar),
                        anneal=1.0, epsilon=1.0, regularization_type='OT',
                        tile_batch=8)
    outs_bf = jax.block_until_ready(outs_bf)
    for o, r in zip(outs_bf, refs_bf):
        np.testing.assert_allclose(np.asarray(o), np.asarray(r),
                                   rtol=1e-3, atol=1e-4)

    print("KERNEL_OK")
</pallas_src>

<mosaic_0001>
module attributes {stable_mosaic.version = 11 : i64} {
  func.func @kernel(%arg0: i32, %arg1: i32, %arg2: memref<32x256xf32, #tpu.memory_space<vmem>>, %arg3: memref<32x256xf32, #tpu.memory_space<vmem>>, %arg4: memref<32x256xf32, #tpu.memory_space<vmem>>, %arg5: memref<32x256xf32, #tpu.memory_space<vmem>>, %arg6: memref<32x128xf32, #tpu.memory_space<vmem>>, %arg7: memref<32x128xf32, #tpu.memory_space<vmem>>, %arg8: memref<32x128xf32, #tpu.memory_space<vmem>>, %arg9: memref<32x128xf32, #tpu.memory_space<vmem>>, %arg10: memref<1x8x128xf32, #tpu.memory_space<vmem>>, %arg11: memref<1x1xf32, #tpu.memory_space<vmem>>, %arg12: memref<1x1xf32, #tpu.memory_space<vmem>>, %arg13: memref<1x1xf32, #tpu.memory_space<vmem>>, %arg14: memref<1x1xf32, #tpu.memory_space<vmem>>, %arg15: memref<1x1xf32, #tpu.memory_space<vmem>>, %arg16: memref<1x1xf32, #tpu.memory_space<vmem>>) attributes {dimension_semantics = [#tpu.dimension_semantics<parallel>, #tpu.dimension_semantics<arbitrary>], iteration_bounds = array<i64: 1, 1>, scalar_prefetch = 0 : i64, scratch_operands = 6 : i64, tpu.core_type = #tpu.core_type<tc>, window_params = [{transform_indices = @transform_0, window_bounds = array<i64: 32, 256>}, {transform_indices = @transform_1, window_bounds = array<i64: 32, 256>}, {transform_indices = @transform_2, window_bounds = array<i64: 32, 256>}, {transform_indices = @transform_3, window_bounds = array<i64: 32, 256>}, {transform_indices = @transform_4, window_bounds = array<i64: 32, 128>}, {transform_indices = @transform_5, window_bounds = array<i64: 32, 128>}, {transform_indices = @transform_6, window_bounds = array<i64: 32, 128>}, {transform_indices = @transform_7, window_bounds = array<i64: 32, 128>}, {transform_indices = @transform_8, window_bounds = array<i64: 1, 8, 128>}]} {
    %c0_i32 = arith.constant 0 : i32
    %0 = arith.cmpi eq, %arg1, %c0_i32 : i32
    %1 = arith.extui %0 : i1 to i32
    %c0_i32_0 = arith.constant 0 : i32
    %2 = arith.cmpi ne, %1, %c0_i32_0 : i32
    scf.if %2 {
      %cst_64 = arith.constant 0.000000e+00 : f32
      %114 = vector.broadcast %cst_64 : f32 to vector<1x1xf32>
      %c0_65 = arith.constant 0 : index
      %c0_66 = arith.constant 0 : index
      %115 = vector.load %arg11[%c0_65, %c0_66] : memref<1x1xf32, #tpu.memory_space<vmem>>, vector<1x1xf32>
      tpu.vector_store %arg11[%c0_65, %c0_66], %114 {strides = array<i32>} : memref<1x1xf32, #tpu.memory_space<vmem>>, vector<1x1xf32>,
      %cst_67 = arith.constant 0.000000e+00 : f32
      %116 = vector.broadcast %cst_67 : f32 to vector<1x1xf32>
      %c0_68 = arith.constant 0 : index
      %c0_69 = arith.constant 0 : index
      %117 = vector.load %arg12[%c0_68, %c0_69] : memref<1x1xf32, #tpu.memory_space<vmem>>, vector<1x1xf32>
      tpu.vector_store %arg12[%c0_68, %c0_69], %116 {strides = array<i32>} : memref<1x1xf32, #tpu.memory_space<vmem>>, vector<1x1xf32>,
      %cst_70 = arith.constant 0.000000e+00 : f32
      %118 = vector.broadcast %cst_70 : f32 to vector<1x1xf32>
      %c0_71 = arith.constant 0 : index
      %c0_72 = arith.constant 0 : index
      %119 = vector.load %arg13[%c0_71, %c0_72] : memref<1x1xf32, #tpu.memory_space<vmem>>, vector<1x1xf32>
      tpu.vector_store %arg13[%c0_71, %c0_72], %118 {strides = array<i32>} : memref<1x1xf32, #tpu.memory_space<vmem>>, vector<1x1xf32>,
      %cst_73 = arith.constant 0.000000e+00 : f32
      %120 = vector.broadcast %cst_73 : f32 to vector<1x1xf32>
      %c0_74 = arith.constant 0 : index
      %c0_75 = arith.constant 0 : index
      %121 = vector.load %arg14[%c0_74, %c0_75] : memref<1x1xf32, #tpu.memory_space<vmem>>, vector<1x1xf32>
      tpu.vector_store %arg14[%c0_74, %c0_75], %120 {strides = array<i32>} : memref<1x1xf32, #tpu.memory_space<vmem>>, vector<1x1xf32>,
      %cst_76 = arith.constant 0.000000e+00 : f32
      %122 = vector.broadcast %cst_76 : f32 to vector<1x1xf32>
      %c0_77 = arith.constant 0 : index
      %c0_78 = arith.constant 0 : index
      %123 = vector.load %arg15[%c0_77, %c0_78] : memref<1x1xf32, #tpu.memory_space<vmem>>, vector<1x1xf32>
      tpu.vector_store %arg15[%c0_77, %c0_78], %122 {strides = array<i32>} : memref<1x1xf32, #tpu.memory_space<vmem>>, vector<1x1xf32>,
      %cst_79 = arith.constant 0.000000e+00 : f32
      %124 = vector.broadcast %cst_79 : f32 to vector<1x1xf32>
      %c0_80 = arith.constant 0 : index
      %c0_81 = arith.constant 0 : index
      %125 = vector.load %arg16[%c0_80, %c0_81] : memref<1x1xf32, #tpu.memory_space<vmem>>, vector<1x1xf32>
      tpu.vector_store %arg16[%c0_80, %c0_81], %124 {strides = array<i32>} : memref<1x1xf32, #tpu.memory_space<vmem>>, vector<1x1xf32>,
    } else {
    }
    %c0 = arith.constant 0 : index
    %c0_1 = arith.constant 0 : index
    %3 = vector.load %arg5[%c0, %c0_1] : memref<32x256xf32, #tpu.memory_space<vmem>>, vector<32x256xf32>
    %cst = arith.constant dense<0.000000e+00> : vector<32xf32>
    %4 = vector.multi_reduction <add>, %3, %cst [1] : vector<32x256xf32> to vector<32xf32>
    %5 = vector.shape_cast %4 : vector<32xf32> to vector<32x1xf32>
    %c0_2 = arith.constant 0 : index
    %c0_3 = arith.constant 0 : index
    %6 = vector.load %arg11[%c0_2, %c0_3] : memref<1x1xf32, #tpu.memory_space<vmem>>, vector<1x1xf32>
    %c0_4 = arith.constant 0 : index
    %c0_5 = arith.constant 0 : index
    %7 = vector.load %arg2[%c0_4, %c0_5] : memref<32x256xf32, #tpu.memory_space<vmem>>, vector<32x256xf32>
    %cst_6 = arith.constant dense<0xFF800000> : vector<32xf32>
    %8 = vector.multi_reduction <maximumf>, %7, %cst_6 [1] : vector<32x256xf32> to vector<32xf32>
    %9 = vector.shape_cast %8 : vector<32xf32> to vector<32x1xf32>
    %10 = vector.broadcast %9 : vector<32x1xf32> to vector<32x256xf32>
    %11 = arith.subf %7, %10 : vector<32x256xf32>
    %12 = math.exp %11 : vector<32x256xf32>
    %cst_7 = arith.constant dense<0.000000e+00> : vector<32xf32>
    %13 = vector.multi_reduction <add>, %12, %cst_7 [1] : vector<32x256xf32> to vector<32xf32>
    %14 = vector.shape_cast %13 : vector<32xf32> to vector<32x1xf32>
    %15 = math.log %14 : vector<32x1xf32>
    %16 = arith.mulf %11, %3 : vector<32x256xf32>
    %cst_8 = arith.constant dense<0.000000e+00> : vector<32xf32>
    %17 = vector.multi_reduction <add>, %16, %cst_8 [1] : vector<32x256xf32> to vector<32xf32>
    %18 = vector.shape_cast %17 : vector<32xf32> to vector<32x1xf32>
    %19 = arith.mulf %15, %5 : vector<32x1xf32>
    %20 = arith.subf %18, %19 : vector<32x1xf32>
    %cst_9 = arith.constant dense<0.000000e+00> : vector<1xf32>
    %21 = vector.multi_reduction <add>, %20, %cst_9 [0] : vector<32x1xf32> to vector<1xf32>
    %22 = vector.shape_cast %21 : vector<1xf32> to vector<1x1xf32>
    %23 = arith.addf %6, %22 : vector<1x1xf32>
    %c0_10 = arith.constant 0 : index
    %c0_11 = arith.constant 0 : index
    %24 = vector.load %arg11[%c0_10, %c0_11] : memref<1x1xf32, #tpu.memory_space<vmem>>, vector<1x1xf32>
    tpu.vector_store %arg11[%c0_10, %c0_11], %23 {strides = array<i32>} : memref<1x1xf32, #tpu.memory_space<vmem>>, vector<1x1xf32>,
    %c0_12 = arith.constant 0 : index
    %c0_13 = arith.constant 0 : index
    %25 = vector.load %arg12[%c0_12, %c0_13] : memref<1x1xf32, #tpu.memory_space<vmem>>, vector<1x1xf32>
    %c0_14 = arith.constant 0 : index
    %c0_15 = arith.constant 0 : index
    %26 = vector.load %arg3[%c0_14, %c0_15] : memref<32x256xf32, #tpu.memory_space<vmem>>, vector<32x256xf32>
    %cst_16 = arith.constant dense<0xFF800000> : vector<32xf32>
    %27 = vector.multi_reduction <maximumf>, %26, %cst_16 [1] : vector<32x256xf32> to vector<32xf32>
    %28 = vector.shape_cast %27 : vector<32xf32> to vector<32x1xf32>
    %29 = vector.broadcast %28 : vector<32x1xf32> to vector<32x256xf32>
    %30 = arith.subf %26, %29 : vector<32x256xf32>
    %31 = math.exp %30 : vector<32x256xf32>
    %cst_17 = arith.constant dense<0.000000e+00> : vector<32xf32>
    %32 = vector.multi_reduction <add>, %31, %cst_17 [1] : vector<32x256xf32> to vector<32xf32>
    %33 = vector.shape_cast %32 : vector<32xf32> to vector<32x1xf32>
    %34 = math.log %33 : vector<32x1xf32>
    %35 = arith.mulf %30, %3 : vector<32x256xf32>
    %cst_18 = arith.constant dense<0.000000e+00> : vector<32xf32>
    %36 = vector.multi_reduction <add>, %35, %cst_18 [1] : vector<32x256xf32> to vector<32xf32>
    %37 = vector.shape_cast %36 : vector<32xf32> to vector<32x1xf32>
    %38 = arith.mulf %34, %5 : vector<32x1xf32>
    %39 = arith.subf %37, %38 : vector<32x1xf32>
    %cst_19 = arith.constant dense<0.000000e+00> : vector<1xf32>
    %40 = vector.multi_reduction <add>, %39, %cst_19 [0] : vector<32x1xf32> to vector<1xf32>
    %41 = vector.shape_cast %40 : vector<1xf32> to vector<1x1xf32>
    %42 = arith.addf %25, %41 : vector<1x1xf32>
    %c0_20 = arith.constant 0 : index
    %c0_21 = arith.constant 0 : index
    %43 = vector.load %arg12[%c0_20, %c0_21] : memref<1x1xf32, #tpu.memory_space<vmem>>, vector<1x1xf32>
    tpu.vector_store %arg12[%c0_20, %c0_21], %42 {strides = array<i32>} : memref<1x1xf32, #tpu.memory_space<vmem>>, vector<1x1xf32>,
    %c0_22 = arith.constant 0 : index
    %c0_23 = arith.constant 0 : index
    %44 = vector.load %arg13[%c0_22, %c0_23] : memref<1x1xf32, #tpu.memory_space<vmem>>, vector<1x1xf32>
    %c0_24 = arith.constant 0 : index
    %c0_25 = arith.constant 0 : index
    %45 = vector.load %arg4[%c0_24, %c0_25] : memref<32x256xf32, #tpu.memory_space<vmem>>, vector<32x256xf32>
    %cst_26 = arith.constant dense<0xFF800000> : vector<32xf32>
    %46 = vector.multi_reduction <maximumf>, %45, %cst_26 [1] : vector<32x256xf32> to vector<32xf32>
    %47 = vector.shape_cast %46 : vector<32xf32> to vector<32x1xf32>
    %48 = vector.broadcast %47 : vector<32x1xf32> to vector<32x256xf32>
    %49 = arith.subf %45, %48 : vector<32x256xf32>
    %50 = math.exp %49 : vector<32x256xf32>
    %cst_27 = arith.constant dense<0.000000e+00> : vector<32xf32>
    %51 = vector.multi_reduction <add>, %50, %cst_27 [1] : vector<32x256xf32> to vector<32xf32>
    %52 = vector.shape_cast %51 : vector<32xf32> to vector<32x1xf32>
    %53 = math.log %52 : vector<32x1xf32>
    %54 = arith.mulf %49, %3 : vector<32x256xf32>
    %cst_28 = arith.constant dense<0.000000e+00> : vector<32xf32>
    %55 = vector.multi_reduction <add>, %54, %cst_28 [1] : vector<32x256xf32> to vector<32xf32>
    %56 = vector.shape_cast %55 : vector<32xf32> to vector<32x1xf32>
    %57 = arith.mulf %53, %5 : vector<32x1xf32>
    %58 = arith.subf %56, %57 : vector<32x1xf32>
    %cst_29 = arith.constant dense<0.000000e+00> : vector<1xf32>
    %59 = vector.multi_reduction <add>, %58, %cst_29 [0] : vector<32x1xf32> to vector<1xf32>
    %60 = vector.shape_cast %59 : vector<1xf32> to vector<1x1xf32>
    %61 = arith.addf %44, %60 : vector<1x1xf32>
    %c0_30 = arith.constant 0 : index
    %c0_31 = arith.constant 0 : index
    %62 = vector.load %arg13[%c0_30, %c0_31] : memref<1x1xf32, #tpu.memory_space<vmem>>, vector<1x1xf32>
    tpu.vector_store %arg13[%c0_30, %c0_31], %61 {strides = array<i32>} : memref<1x1xf32, #tpu.memory_space<vmem>>, vector<1x1xf32>,
    %c0_32 = arith.constant 0 : index
    %c0_33 = arith.constant 0 : index
    %63 = vector.load %arg6[%c0_32, %c0_33] : memref<32x128xf32, #tpu.memory_space<vmem>>, vector<32x128xf32>
    %c0_34 = arith.constant 0 : index
    %c0_35 = arith.constant 0 : index
    %64 = vector.load %arg7[%c0_34, %c0_35] : memref<32x128xf32, #tpu.memory_space<vmem>>, vector<32x128xf32>
    %c0_36 = arith.constant 0 : index
    %c0_37 = arith.constant 0 : index
    %65 = vector.load %arg8[%c0_36, %c0_37] : memref<32x128xf32, #tpu.memory_space<vmem>>, vector<32x128xf32>
    %c0_38 = arith.constant 0 : index
    %c0_39 = arith.constant 0 : index
    %66 = vector.load %arg9[%c0_38, %c0_39] : memref<32x128xf32, #tpu.memory_space<vmem>>, vector<32x128xf32>
    %cst_40 = arith.constant 5.000000e-01 : f32
    %67 = vector.broadcast %cst_40 : f32 to vector<32x128xf32>
    %68 = arith.mulf %67, %64 : vector<32x128xf32>
    %69 = math.exp %68 : vector<32x128xf32>
    %cst_41 = arith.constant 5.000000e-01 : f32
    %70 = vector.broadcast %cst_41 : f32 to vector<32x128xf32>
    %71 = arith.mulf %70, %66 : vector<32x128xf32>
    %72 = math.exp %71 : vector<32x128xf32>
    %73 = arith.mulf %69, %69 : vector<32x128xf32>
    %74 = arith.mulf %72, %72 : vector<32x128xf32>
    %c0_42 = arith.constant 0 : index
    %c0_43 = arith.constant 0 : index
    %75 = vector.load %arg14[%c0_42, %c0_43] : memref<1x1xf32, #tpu.memory_space<vmem>>, vector<1x1xf32>
    %cst_44 = arith.constant 1.000000e+00 : f32
    %76 = vector.broadcast %cst_44 : f32 to vector<32x128xf32>
    %77 = arith.addf %76, %64 : vector<32x128xf32>
    %78 = arith.mulf %63, %63 : vector<32x128xf32>
    %79 = arith.subf %77, %78 : vector<32x128xf32>
    %80 = arith.subf %79, %73 : vector<32x128xf32>
    %cst_45 = arith.constant dense<0.000000e+00> : vector<32xf32>
    %81 = vector.multi_reduction <add>, %80, %cst_45 [1] : vector<32x128xf32> to vector<32xf32>
    %82 = vector.shape_cast %81 : vector<32xf32> to vector<32x1xf32>
    %cst_46 = arith.constant dense<0.000000e+00> : vector<1xf32>
    %83 = vector.multi_reduction <add>, %82, %cst_46 [0] : vector<32x1xf32> to vector<1xf32>
    %84 = vector.shape_cast %83 : vector<1xf32> to vector<1x1xf32>
    %85 = arith.addf %75, %84 : vector<1x1xf32>
    %c0_47 = arith.constant 0 : index
    %c0_48 = arith.constant 0 : index
    %86 = vector.load %arg14[%c0_47, %c0_48] : memref<1x1xf32, #tpu.memory_space<vmem>>, vector<1x1xf32>
    tpu.vector_store %arg14[%c0_47, %c0_48], %85 {strides = array<i32>} : memref<1x1xf32, #tpu.memory_space<vmem>>, vector<1x1xf32>,
    %c0_49 = arith.constant 0 : index
    %c0_50 = arith.constant 0 : index
    %87 = vector.load %arg15[%c0_49, %c0_50] : memref<1x1xf32, #tpu.memory_space<vmem>>, vector<1x1xf32>
    %cst_51 = arith.constant 1.000000e+00 : f32
    %88 = vector.broadcast %cst_51 : f32 to vector<32x128xf32>
    %89 = arith.addf %88, %66 : vector<32x128xf32>
    %90 = arith.mulf %65, %65 : vector<32x128xf32>
    %91 = arith.subf %89, %90 : vector<32x128xf32>
    %92 = arith.subf %91, %74 : vector<32x128xf32>
    %cst_52 = arith.constant dense<0.000000e+00> : vector<32xf32>
    %93 = vector.multi_reduction <add>, %92, %cst_52 [1] : vector<32x128xf32> to vector<32xf32>
    %94 = vector.shape_cast %93 : vector<32xf32> to vector<32x1xf32>
    %cst_53 = arith.constant dense<0.000000e+00> : vector<1xf32>
    %95 = vector.multi_reduction <add>, %94, %cst_53 [0] : vector<32x1xf32> to vector<1xf32>
    %96 = vector.shape_cast %95 : vector<1xf32> to vector<1x1xf32>
    %97 = arith.addf %87, %96 : vector<1x1xf32>
    %c0_54 = arith.constant 0 : index
    %c0_55 = arith.constant 0 : index
    %98 = vector.load %arg15[%c0_54, %c0_55] : memref<1x1xf32, #tpu.memory_space<vmem>>, vector<1x1xf32>
    tpu.vector_store %arg15[%c0_54, %c0_55], %97 {strides = array<i32>} : memref<1x1xf32, #tpu.memory_space<vmem>>, vector<1x1xf32>,
    %99 = arith.subf %63, %65 : vector<32x128xf32>
    %100 = arith.subf %69, %72 : vector<32x128xf32>
    %c0_56 = arith.constant 0 : index
    %c0_57 = arith.constant 0 : index
    %101 = vector.load %arg16[%c0_56, %c0_57] : memref<1x1xf32, #tpu.memory_space<vmem>>, vector<1x1xf32>
    %102 = arith.mulf %99, %99 : vector<32x128xf32>
    %103 = arith.mulf %100, %100 : vector<32x128xf32>
    %104 = arith.addf %102, %103 : vector<32x128xf32>
    %cst_58 = arith.constant dense<0.000000e+00> : vector<32xf32>
    %105 = vector.multi_reduction <add>, %104, %cst_58 [1] : vector<32x128xf32> to vector<32xf32>
    %106 = vector.shape_cast %105 : vector<32xf32> to vector<32x1xf32>
    %cst_59 = arith.constant dense<0.000000e+00> : vector<1xf32>
    %107 = vector.multi_reduction <add>, %106, %cst_59 [0] : vector<32x1xf32> to vector<1xf32>
    %108 = vector.shape_cast %107 : vector<1xf32> to vector<1x1xf32>
    %109 = arith.addf %101, %108 : vector<1x1xf32>
    %c0_60 = arith.constant 0 : index
    %c0_61 = arith.constant 0 : index
    %110 = vector.load %arg16[%c0_60, %c0_61] : memref<1x1xf32, #tpu.memory_space<vmem>>, vector<1x1xf32>
    tpu.vector_store %arg16[%c0_60, %c0_61], %109 {strides = array<i32>} : memref<1x1xf32, #tpu.memory_space<vmem>>, vector<1x1xf32>,
    %c0_i32_62 = arith.constant 0 : i32
    %111 = arith.cmpi eq, %arg1, %c0_i32_62 : i32
    %112 = arith.extui %111 : i1 to i32
    %c0_i32_63 = arith.constant 0 : i32
    %113 = arith.cmpi ne, %112, %c0_i32_63 : i32
    scf.if %113 {
      %c0_64 = arith.constant 0 : index
      %c0_65 = arith.constant 0 : index
      %114 = vector.load %arg11[%c0_64, %c0_65] : memref<1x1xf32, #tpu.memory_space<vmem>>, vector<1x1xf32>
      %cst_66 = arith.constant 0.000000e+00 : f32
      %115 = vector.broadcast %cst_66 : f32 to vector<1x1xf32>
      %116 = arith.subf %115, %114 : vector<1x1xf32>
      %cst_67 = arith.constant 1.5024039E-4 : f32
      %117 = vector.broadcast %cst_67 : f32 to vector<1x1xf32>
      %118 = arith.mulf %116, %117 : vector<1x1xf32>
      %c0_68 = arith.constant 0 : index
      %c0_69 = arith.constant 0 : index
      %119 = vector.load %arg12[%c0_68, %c0_69] : memref<1x1xf32, #tpu.memory_space<vmem>>, vector<1x1xf32>
      %cst_70 = arith.constant 0.000000e+00 : f32
      %120 = vector.broadcast %cst_70 : f32 to vector<1x1xf32>
      %121 = arith.subf %120, %119 : vector<1x1xf32>
      %cst_71 = arith.constant 1.5024039E-4 : f32
      %122 = vector.broadcast %cst_71 : f32 to vector<1x1xf32>
      %123 = arith.mulf %121, %122 : vector<1x1xf32>
      %c0_72 = arith.constant 0 : index
      %c0_73 = arith.constant 0 : index
      %124 = vector.load %arg13[%c0_72, %c0_73] : memref<1x1xf32, #tpu.memory_space<vmem>>, vector<1x1xf32>
      %cst_74 = arith.constant 0.000000e+00 : f32
      %125 = vector.broadcast %cst_74 : f32 to vector<1x1xf32>
      %126 = arith.subf %125, %124 : vector<1x1xf32>
      %cst_75 = arith.constant 1.5024039E-4 : f32
      %127 = vector.broadcast %cst_75 : f32 to vector<1x1xf32>
      %128 = arith.mulf %126, %127 : vector<1x1xf32>
      %c0_76 = arith.constant 0 : index
      %c0_77 = arith.constant 0 : index
      %129 = vector.load %arg14[%c0_76, %c0_77] : memref<1x1xf32, #tpu.memory_space<vmem>>, vector<1x1xf32>
      %cst_78 = arith.constant -1.5024039E-4 : f32
      %130 = vector.broadcast %cst_78 : f32 to vector<1x1xf32>
      %131 = arith.mulf %130, %129 : vector<1x1xf32>
      %c0_79 = arith.constant 0 : index
      %c0_80 = arith.constant 0 : index
      %132 = vector.load %arg15[%c0_79, %c0_80] : memref<1x1xf32, #tpu.memory_space<vmem>>, vector<1x1xf32>
      %cst_81 = arith.constant -1.5024039E-4 : f32
      %133 = vector.broadcast %cst_81 : f32 to vector<1x1xf32>
      %134 = arith.mulf %133, %132 : vector<1x1xf32>
      %c0_82 = arith.constant 0 : index
      %c0_83 = arith.constant 0 : index
      %135 = vector.load %arg16[%c0_82, %c0_83] : memref<1x1xf32, #tpu.memory_space<vmem>>, vector<1x1xf32>
      %cst_84 = arith.constant 0.0384615399 : f32
      %136 = vector.broadcast %cst_84 : f32 to vector<1x1xf32>
      %137 = arith.mulf %135, %136 : vector<1x1xf32>
      %138 = tpu.iota {dimensions = array<i32: 0>} : vector<8x128xi32>
      %cst_85 = arith.constant 0.000000e+00 : f32
      %139 = vector.broadcast %cst_85 : f32 to vector<8x128xf32>
      %c0_i32_86 = arith.constant 0 : i32
      %140 = vector.broadcast %c0_i32_86 : i32 to vector<8x128xi32>
      %141 = arith.cmpi eq, %138, %140 : vector<8x128xi32>
      %142 = vector.shape_cast %118 : vector<1x1xf32> to vector<1x1xf32>
      %143 = vector.broadcast %142 : vector<1x1xf32> to vector<8x128xf32>
      %144 = arith.select %141, %143, %139 : vector<8x128xi1>, vector<8x128xf32>
      %c1_i32 = arith.constant 1 : i32
      %145 = vector.broadcast %c1_i32 : i32 to vector<8x128xi32>
      %146 = arith.cmpi eq, %138, %145 : vector<8x128xi32>
      %147 = vector.shape_cast %123 : vector<1x1xf32> to vector<1x1xf32>
      %148 = vector.broadcast %147 : vector<1x1xf32> to vector<8x128xf32>
      %149 = arith.select %146, %148, %139 : vector<8x128xi1>, vector<8x128xf32>
      %150 = arith.addf %144, %149 : vector<8x128xf32>
      %c2_i32 = arith.constant 2 : i32
      %151 = vector.broadcast %c2_i32 : i32 to vector<8x128xi32>
      %152 = arith.cmpi eq, %138, %151 : vector<8x128xi32>
      %153 = vector.shape_cast %128 : vector<1x1xf32> to vector<1x1xf32>
      %154 = vector.broadcast %153 : vector<1x1xf32> to vector<8x128xf32>
      %155 = arith.select %152, %154, %139 : vector<8x128xi1>, vector<8x128xf32>
      %156 = arith.addf %150, %155 : vector<8x128xf32>
      %c3_i32 = arith.constant 3 : i32
      %157 = vector.broadcast %c3_i32 : i32 to vector<8x128xi32>
      %158 = arith.cmpi eq, %138, %157 : vector<8x128xi32>
      %159 = vector.shape_cast %131 : vector<1x1xf32> to vector<1x1xf32>
      %160 = vector.broadcast %159 : vector<1x1xf32> to vector<8x128xf32>
      %161 = arith.select %158, %160, %139 : vector<8x128xi1>, vector<8x128xf32>
      %162 = arith.addf %156, %161 : vector<8x128xf32>
      %c4_i32 = arith.constant 4 : i32
      %163 = vector.broadcast %c4_i32 : i32 to vector<8x128xi32>
      %164 = arith.cmpi eq, %138, %163 : vector<8x128xi32>
      %165 = vector.shape_cast %134 : vector<1x1xf32> to vector<1x1xf32>
      %166 = vector.broadcast %165 : vector<1x1xf32> to vector<8x128xf32>
      %167 = arith.select %164, %166, %139 : vector<8x128xi1>, vector<8x128xf32>
      %168 = arith.addf %162, %167 : vector<8x128xf32>
      %c5_i32 = arith.constant 5 : i32
      %169 = vector.broadcast %c5_i32 : i32 to vector<8x128xi32>
      %170 = arith.cmpi eq, %138, %169 : vector<8x128xi32>
      %171 = vector.shape_cast %137 : vector<1x1xf32> to vector<1x1xf32>
      %172 = vector.broadcast %171 : vector<1x1xf32> to vector<8x128xf32>
      %173 = arith.select %170, %172, %139 : vector<8x128xi1>, vector<8x128xf32>
      %174 = arith.addf %168, %173 : vector<8x128xf32>
      %c0_87 = arith.constant 0 : index
      %c0_88 = arith.constant 0 : index
      %c0_89 = arith.constant 0 : index
      %175 = vector.load %arg10[%c0_87, %c0_88, %c0_89] : memref<1x8x128xf32, #tpu.memory_space<vmem>>, vector<1x8x128xf32>
      %176 = vector.shape_cast %175 : vector<1x8x128xf32> to vector<8x128xf32>
      %177 = vector.shape_cast %174 : vector<8x128xf32> to vector<1x8x128xf32>
      tpu.vector_store %arg10[%c0_87, %c0_88, %c0_89], %177 {strides = array<i32>} : memref<1x8x128xf32, #tpu.memory_space<vmem>>, vector<1x8x128xf32>,
    } else {
    }
    return
  }
  func.func @transform_0(%arg0: i32, %arg1: i32) -> (i32, i32) {
    %c1_i32 = arith.constant 1 : i32
    %0 = arith.muli %arg0, %c1_i32 : i32
    %1 = arith.addi %0, %arg1 : i32
    %c0_i32 = arith.constant 0 : i32
    %c0_i32_0 = arith.constant 0 : i32
    return %1, %c0_i32 : i32, i32
  }
  func.func @transform_1(%arg0: i32, %arg1: i32) -> (i32, i32) {
    %c1_i32 = arith.constant 1 : i32
    %0 = arith.muli %arg0, %c1_i32 : i32
    %1 = arith.addi %0, %arg1 : i32
    %c0_i32 = arith.constant 0 : i32
    %c0_i32_0 = arith.constant 0 : i32
    return %1, %c0_i32 : i32, i32
  }
  func.func @transform_2(%arg0: i32, %arg1: i32) -> (i32, i32) {
    %c1_i32 = arith.constant 1 : i32
    %0 = arith.muli %arg0, %c1_i32 : i32
    %1 = arith.addi %0, %arg1 : i32
    %c0_i32 = arith.constant 0 : i32
    %c0_i32_0 = arith.constant 0 : i32
    return %1, %c0_i32 : i32, i32
  }
  func.func @transform_3(%arg0: i32, %arg1: i32) -> (i32, i32) {
    %c1_i32 = arith.constant 1 : i32
    %0 = arith.muli %arg0, %c1_i32 : i32
    %1 = arith.addi %0, %arg1 : i32
    %c0_i32 = arith.constant 0 : i32
    %c0_i32_0 = arith.constant 0 : i32
    return %1, %c0_i32 : i32, i32
  }
  func.func @transform_4(%arg0: i32, %arg1: i32) -> (i32, i32) {
    %c1_i32 = arith.constant 1 : i32
    %0 = arith.muli %arg0, %c1_i32 : i32
    %1 = arith.addi %0, %arg1 : i32
    %c0_i32 = arith.constant 0 : i32
    %c0_i32_0 = arith.constant 0 : i32
    return %1, %c0_i32 : i32, i32
  }
  func.func @transform_5(%arg0: i32, %arg1: i32) -> (i32, i32) {
    %c1_i32 = arith.constant 1 : i32
    %0 = arith.muli %arg0, %c1_i32 : i32
    %1 = arith.addi %0, %arg1 : i32
    %c0_i32 = arith.constant 0 : i32
    %c0_i32_0 = arith.constant 0 : i32
    return %1, %c0_i32 : i32, i32
  }
  func.func @transform_6(%arg0: i32, %arg1: i32) -> (i32, i32) {
    %c1_i32 = arith.constant 1 : i32
    %0 = arith.muli %arg0, %c1_i32 : i32
    %1 = arith.addi %0, %arg1 : i32
    %c0_i32 = arith.constant 0 : i32
    %c0_i32_0 = arith.constant 0 : i32
    return %1, %c0_i32 : i32, i32
  }
  func.func @transform_7(%arg0: i32, %arg1: i32) -> (i32, i32) {
    %c1_i32 = arith.constant 1 : i32
    %0 = arith.muli %arg0, %c1_i32 : i32
    %1 = arith.addi %0, %arg1 : i32
    %c0_i32 = arith.constant 0 : i32
    %c0_i32_0 = arith.constant 0 : i32
    return %1, %c0_i32 : i32, i32
  }
  func.func @transform_8(%arg0: i32, %arg1: i32) -> (i32, i32, i32) {
    %c0_i32 = arith.constant 0 : i32
    %c0_i32_0 = arith.constant 0 : i32
    %c0_i32_1 = arith.constant 0 : i32
    return %arg0, %c0_i32, %c0_i32_0 : i32, i32, i32
  }
}

</mosaic_0001>

<llo_original>
// kernel: tpu_custom_call.1
$region0: #{tpu_custom_call.1}
  #allocation0 [shape = 'u32[]', space=smem, size = 0x4, offset = 0x4, fixed_abs, tag = 'smem constant byte address 0x4 - core index']
  #allocation1 [shape = 'u32[72,128]{1,0:T(1,128)}', space=vmem, size = 0x9000, scoped, tag = 'internal scratch']
  #allocation2 [shape = 'f32[1,1]{1,0:T(1,128)}', space=vmem, size = 0x200, scoped, tag = 'scratch operand']
  #allocation3 [shape = 'f32[1,1]{1,0:T(1,128)}', space=vmem, size = 0x200, scoped, tag = 'scratch operand']
  #allocation4 [shape = 'f32[1,1]{1,0:T(1,128)}', space=vmem, size = 0x200, scoped, tag = 'scratch operand']
  #allocation5 [shape = 'f32[1,1]{1,0:T(1,128)}', space=vmem, size = 0x200, scoped, tag = 'scratch operand']
  #allocation6 [shape = 'f32[1,1]{1,0:T(1,128)}', space=vmem, size = 0x200, scoped, tag = 'scratch operand']
  #allocation7 [shape = 'f32[1,1]{1,0:T(1,128)}', space=vmem, size = 0x200, scoped, tag = 'scratch operand']
  %s0 = inlined_call_operand.hbm [shape: f32[32,256], index: 0, kind: input, shape index: {}]
  %s1 = inlined_call_operand.hbm [shape: f32[32,256], index: 1, kind: input, shape index: {}]
  %s2 = inlined_call_operand.hbm [shape: f32[32,256], index: 2, kind: input, shape index: {}]
  %s3 = inlined_call_operand.hbm [shape: f32[32,256], index: 3, kind: input, shape index: {}]
  %s4 = inlined_call_operand.hbm [shape: f32[32,128], index: 4, kind: input, shape index: {}]
  %s5 = inlined_call_operand.hbm [shape: f32[32,128], index: 5, kind: input, shape index: {}]
  %s6 = inlined_call_operand.hbm [shape: f32[32,128], index: 6, kind: input, shape index: {}]
  %s7 = inlined_call_operand.hbm [shape: f32[32,128], index: 7, kind: input, shape index: {}]
  %s8 = inlined_call_operand.hbm [shape: f32[1,8,128], index: 8, kind: output, shape index: {}]
  %s9 = sld [smem:[#allocation0]]
  $region82: #{tpu_custom_call.1} parent=0
    _
  %s11 = ssub.s32 1, %s9
  %s12 = scalar_select 0, %s11, %s9
  $region1: #{tpu_custom_call.1} parent=0
    #allocation8 [shape = 'u8[32768]{0}', space=vmem, size = 0x8000, scoped, tag = 'input window, operand 0, single buffered']
    #allocation9 [shape = 's32[1]{0}', space=sflag, size = 0x4, scoped, tag = 'scoped memory for tpu_custom_call.1']
    #allocation10 [shape = 's32[1]{0}', space=sflag, size = 0x4, scoped, tag = 'scoped memory for tpu_custom_call.1']
    #allocation11 [shape = 'u8[32768]{0}', space=vmem, size = 0x8000, scoped, tag = 'input window, operand 1, single buffered']
    #allocation12 [shape = 's32[1]{0}', space=sflag, size = 0x4, scoped, tag = 'scoped memory for tpu_custom_call.1']
    #allocation13 [shape = 'u8[32768]{0}', space=vmem, size = 0x8000, scoped, tag = 'input window, operand 2, single buffered']
    #allocation14 [shape = 'u8[32768]{0}', space=vmem, size = 0x8000, scoped, tag = 'input window, operand 3, single buffered']
    #allocation15 [shape = 's32[1]{0}', space=sflag, size = 0x4, scoped, tag = 'scoped memory for tpu_custom_call.1']
    #allocation16 [shape = 'u8[16384]{0}', space=vmem, size = 0x4000, scoped, tag = 'input window, operand 4, single buffered']
    #allocation17 [shape = 'u8[16384]{0}', space=vmem, size = 0x4000, scoped, tag = 'input window, operand 5, single buffered']
    #allocation18 [shape = 's32[1]{0}', space=sflag, size = 0x4, scoped, tag = 'scoped memory for tpu_custom_call.1']
    #allocation19 [shape = 'u8[16384]{0}', space=vmem, size = 0x4000, scoped, tag = 'input window, operand 6, single buffered']
    #allocation20 [shape = 'u8[16384]{0}', space=vmem, size = 0x4000, scoped, tag = 'input window, operand 7, single buffered']
    #allocation21 [shape = 's32[1]{0}', space=sflag, size = 0x4, scoped, tag = 'scoped memory for tpu_custom_call.1']
    #allocation22 [shape = 'u8[4096]{0}', space=vmem, size = 0x1000, scoped, tag = 'output window, operand 0, single buffered']
    %13 = vsyncpa [#allocation9], 0
    %14 = vsyncpa [#allocation12], 0
    %15 = vsyncpa [#allocation15], 0
    %16 = vsyncpa [#allocation18], 0
    %17 = vsyncpa [#allocation21], 0
    %18 = vsyncpa [#allocation10], 0
    // Predicated region
    $region2: #{tpu_custom_call.1} parent=1 // pred_check
      _
    $region3: #{tpu_custom_call.1} parent=1 // pred_check_branch
      %20 = sbr.rel (0) target = $region5
    $region4: #{tpu_custom_call.1} parent=1 // pred_region
      %s21 = sadd.s32 0, 0
      %s22 = smul.u32 4, %s21
      %24 = vsyncadd [#allocation9], 0
      %s25 = smul.addr %s22, 2
      %s26 = smul.addr %s25, 8
      %s27 = scalar_lea.hbm %s0, %s26
      %s28 = sshll.u32 %s27, 4
      %s29 = int_to_ptr.hbm [resolvable:$true] %s28
      %s30 = sshll.u32 [#allocation8], 4
      %s31 = int_to_ptr.vmem [resolvable:$true] %s30
      %36 = dma.hbm_to_vmem [thread:$0]  %s29, 1024, %s31, [#allocation9], 256, 256, 16
    $region5: #{tpu_custom_call.1} parent=1 // pred_fallthru
      _
    // Predicated region
    $region6: #{tpu_custom_call.1} parent=1 // pred_check
      _
    $region7: #{tpu_custom_call.1} parent=1 // pred_check_branch
      %38 = sbr.rel (0) target = $region9
    $region8: #{tpu_custom_call.1} parent=1 // pred_region
      %s39 = sadd.s32 0, 0
      %s40 = smul.u32 4, %s39
      %42 = vsyncadd [#allocation12], 0
      %s43 = smul.addr %s40, 2
      %s44 = smul.addr %s43, 8
      %s45 = scalar_lea.hbm %s1, %s44
      %s46 = sshll.u32 %s45, 4
      %s47 = int_to_ptr.hbm [resolvable:$true] %s46
      %s48 = sshll.u32 [#allocation11], 4
      %s49 = int_to_ptr.vmem [resolvable:$true] %s48
      %54 = dma.hbm_to_vmem [thread:$0]  %s47, 1024, %s49, [#allocation12], 256, 256, 16
    $region9: #{tpu_custom_call.1} parent=1 // pred_fallthru
      _
    // Predicated region
    $region10: #{tpu_custom_call.1} parent=1 // pred_check
      _
    $region11: #{tpu_custom_call.1} parent=1 // pred_check_branch
      %56 = sbr.rel (0) target = $region13
    $region12: #{tpu_custom_call.1} parent=1 // pred_region
      %s57 = sadd.s32 0, 0
      %s58 = smul.u32 4, %s57
      %60 = vsyncadd [#allocation12], 0
      %s61 = smul.addr %s58, 2
      %s62 = smul.addr %s61, 8
      %s63 = scalar_lea.hbm %s2, %s62
      %s64 = sshll.u32 %s63, 4
      %s65 = int_to_ptr.hbm [resolvable:$true] %s64
      %s66 = sshll.u32 [#allocation13], 4
      %s67 = int_to_ptr.vmem [resolvable:$true] %s66
      %72 = dma.hbm_to_vmem [thread:$0]  %s65, 1024, %s67, [#allocation12], 256, 256, 16
    $region13: #{tpu_custom_call.1} parent=1 // pred_fallthru
      _
    // Predicated region
    $region14: #{tpu_custom_call.1} parent=1 // pred_check
      _
    $region15: #{tpu_custom_call.1} parent=1 // pred_check_branch
      %74 = sbr.rel (0) target = $region17
    $region16: #{tpu_custom_call.1} parent=1 // pred_region
      %s75 = sadd.s32 0, 0
      %s76 = smul.u32 4, %s75
      %78 = vsyncadd [#allocation15], 0
      %s79 = smul.addr %s76, 2
      %s80 = smul.addr %s79, 8
      %s81 = scalar_lea.hbm %s3, %s80
      %s82 = sshll.u32 %s81, 4
      %s83 = int_to_ptr.hbm [resolvable:$true] %s82
      %s84 = sshll.u32 [#allocation14], 4
      %s85 = int_to_ptr.vmem [resolvable:$true] %s84
      %90 = dma.hbm_to_vmem [thread:$0]  %s83, 1024, %s85, [#allocation15], 256, 256, 16
    $region17: #{tpu_custom_call.1} parent=1 // pred_fallthru
      _
    // Predicated region
    $region18: #{tpu_custom_call.1} parent=1 // pred_check
      _
    $region19: #{tpu_custom_call.1} parent=1 // pred_check_branch
      %92 = sbr.rel (0) target = $region21
    $region20: #{tpu_custom_call.1} parent=1 // pred_region
      %s93 = sadd.s32 0, 0
      %s94 = smul.u32 4, %s93
      %96 = vsyncadd [#allocation15], 0
      %s97 = smul.addr %s94, 8
      %s98 = scalar_lea.hbm %s4, %s97
      %s99 = sshll.u32 %s98, 4
      %s100 = int_to_ptr.hbm [resolvable:$true] %s99
      %s101 = sshll.u32 [#allocation16], 4
      %s102 = int_to_ptr.vmem [resolvable:$true] %s101
      %107 = dma.hbm_to_vmem [thread:$0]  %s100, 512, %s102, [#allocation15], 128, 128, 8
    $region21: #{tpu_custom_call.1} parent=1 // pred_fallthru
      _
    // Predicated region
    $region22: #{tpu_custom_call.1} parent=1 // pred_check
      _
    $region23: #{tpu_custom_call.1} parent=1 // pred_check_branch
      %109 = sbr.rel (0) target = $region25
    $region24: #{tpu_custom_call.1} parent=1 // pred_region
      %s110 = sadd.s32 0, 0
      %s111 = smul.u32 4, %s110
      %113 = vsyncadd [#allocation18], 0
      %s114 = smul.addr %s111, 8
      %s115 = scalar_lea.hbm %s5, %s114
      %s116 = sshll.u32 %s115, 4
      %s117 = int_to_ptr.hbm [resolvable:$true] %s116
      %s118 = sshll.u32 [#allocation17], 4
      %s119 = int_to_ptr.vmem [resolvable:$true] %s118
      %124 = dma.hbm_to_vmem [thread:$0]  %s117, 512, %s119, [#allocation18], 128, 128, 8
    $region25: #{tpu_custom_call.1} parent=1 // pred_fallthru
      _
    // Predicated region
    $region26: #{tpu_custom_call.1} parent=1 // pred_check
      _
    $region27: #{tpu_custom_call.1} parent=1 // pred_check_branch
      %126 = sbr.rel (0) target = $region29
    $region28: #{tpu_custom_call.1} parent=1 // pred_region
      %s127 = sadd.s32 0, 0
      %s128 = smul.u32 4, %s127
      %130 = vsyncadd [#allocation18], 0
      %s131 = smul.addr %s128, 8
      %s132 = scalar_lea.hbm %s6, %s131
      %s133 = sshll.u32 %s132, 4
      %s134 = int_to_ptr.hbm [resolvable:$true] %s133
      %s135 = sshll.u32 [#allocation19], 4
      %s136 = int_to_ptr.vmem [resolvable:$true] %s135
      %141 = dma.hbm_to_vmem [thread:$0]  %s134, 512, %s136, [#allocation18], 128, 128, 8
    $region29: #{tpu_custom_call.1} parent=1 // pred_fallthru
      _
    // Predicated region
    $region30: #{tpu_custom_call.1} parent=1 // pred_check
      _
    $region31: #{tpu_custom_call.1} parent=1 // pred_check_branch
      %143 = sbr.rel (0) target = $region33
    $region32: #{tpu_custom_call.1} parent=1 // pred_region
      %s144 = sadd.s32 0, 0
      %s145 = smul.u32 4, %s144
      %147 = vsyncadd [#allocation21], 0
      %s148 = smul.addr %s145, 8
      %s149 = scalar_lea.hbm %s7, %s148
      %s150 = sshll.u32 %s149, 4
      %s151 = int_to_ptr.hbm [resolvable:$true] %s150
      %s152 = sshll.u32 [#allocation20], 4
      %s153 = int_to_ptr.vmem [resolvable:$true] %s152
      %158 = dma.hbm_to_vmem [thread:$0]  %s151, 512, %s153, [#allocation21], 128, 128, 8
    $region33: #{tpu_custom_call.1} parent=1 // pred_fallthru
      _
    // Predicated region
    $region34: #{tpu_custom_call.1} parent=1 // pred_check
      _
    $region35: #{tpu_custom_call.1} parent=1 // pred_check_branch
      %160 = sbr.rel (0) target = $region37
    $region36: #{tpu_custom_call.1} parent=1 // pred_region
      %162 = dma.done [#allocation9], 1024
    $region37: #{tpu_custom_call.1} parent=1 // pred_fallthru
      _
    // Predicated region
    $region38: #{tpu_custom_call.1} parent=1 // pred_check
      _
    $region39: #{tpu_custom_call.1} parent=1 // pred_check_branch
      %164 = sbr.rel (0) target = $region41
    $region40: #{tpu_custom_call.1} parent=1 // pred_region
      %166 = dma.done [#allocation12], 1024
    $region41: #{tpu_custom_call.1} parent=1 // pred_fallthru
      _
    // Predicated region
    $region42: #{tpu_custom_call.1} parent=1 // pred_check
      _
    $region43: #{tpu_custom_call.1} parent=1 // pred_check_branch
      %168 = sbr.rel (0) target = $region45
    $region44: #{tpu_custom_call.1} parent=1 // pred_region
      %170 = dma.done [#allocation12], 1024
    $region45: #{tpu_custom_call.1} parent=1 // pred_fallthru
      _
    // Predicated region
    $region46: #{tpu_custom_call.1} parent=1 // pred_check
      _
    $region47: #{tpu_custom_call.1} parent=1 // pred_check_branch
      %172 = sbr.rel (0) target = $region49
    $region48: #{tpu_custom_call.1} parent=1 // pred_region
      %174 = dma.done [#allocation15], 1024
    $region49: #{tpu_custom_call.1} parent=1 // pred_fallthru
      _
    // Predicated region
    $region50: #{tpu_custom_call.1} parent=1 // pred_check
      _
    $region51: #{tpu_custom_call.1} parent=1 // pred_check_branch
      %176 = sbr.rel (0) target = $region53
    $region52: #{tpu_custom_call.1} parent=1 // pred_region
      %178 = dma.done [#allocation15], 512
    $region53: #{tpu_custom_call.1} parent=1 // pred_fallthru
      _
    // Predicated region
    $region54: #{tpu_custom_call.1} parent=1 // pred_check
      _
    $region55: #{tpu_custom_call.1} parent=1 // pred_check_branch
      %180 = sbr.rel (0) target = $region57
    $region56: #{tpu_custom_call.1} parent=1 // pred_region
      %182 = dma.done [#allocation18], 512
    $region57: #{tpu_custom_call.1} parent=1 // pred_fallthru
      _
    // Predicated region
    $region58: #{tpu_custom_call.1} parent=1 // pred_check
      _
    $region59: #{tpu_custom_call.1} parent=1 // pred_check_branch
      %184 = sbr.rel (0) target = $region61
    $region60: #{tpu_custom_call.1} parent=1 // pred_region
      %186 = dma.done [#allocation18], 512
    $region61: #{tpu_custom_call.1} parent=1 // pred_fallthru
      _
    // Predicated region
    $region62: #{tpu_custom_call.1} parent=1 // pred_check
      _
    $region63: #{tpu_custom_call.1} parent=1 // pred_check_branch
      %188 = sbr.rel (0) target = $region65
    $region64: #{tpu_custom_call.1} parent=1 // pred_region
      %190 = dma.done [#allocation21], 512
    $region65: #{tpu_custom_call.1} parent=1 // pred_fallthru
      _
    %s191 = sadd.s32 0, 0
    %s192 = smul.u32 4, %s191
    %s193 = sadd.s32 0, 0
    %s194 = smul.u32 4, %s193
    %s195 = sadd.s32 0, 0
    %s196 = smul.u32 4, %s195
    %s197 = sadd.s32 0, 0
    %s198 = smul.u32 4, %s197
    %s199 = sadd.s32 0, 0
    %s200 = smul.u32 4, %s199
    %s201 = sadd.s32 0, 0
    %s202 = smul.u32 4, %s201
    %s203 = sadd.s32 0, 0
    %s204 = smul.u32 4, %s203
    %s205 = sadd.s32 0, 0
    %s206 = smul.u32 4, %s205
    %p207 = scmp.eq.s32.totalorder 0, 0
    // Predicated region
    $region66: #{tpu_custom_call.1} parent=1 // pred_check
      %p208 = pneg %p207
    $region67: #{tpu_custom_call.1} parent=1 // pred_check_branch
      %210 = sbr.rel (%p208) target = $region69
    $region68: #{tpu_custom_call.1} parent=1 // pred_region
      %vm211 = vcmask 0
      %212 = vst.msk [vmem:[#allocation2] sm:$0x1] %vm211, 0.0
      %213 = vst.msk [vmem:[#allocation3] sm:$0x1] %vm211, 0.0
      %214 = vst.msk [vmem:[#allocation4] sm:$0x1] %vm211, 0.0
      %215 = vst.msk [vmem:[#allocation5] sm:$0x1] %vm211, 0.0
      %216 = vst.msk [vmem:[#allocation6] sm:$0x1] %vm211, 0.0
      %217 = vst.msk [vmem:[#allocation7] sm:$0x1] %vm211, 0.0
    $region69: #{tpu_custom_call.1} parent=1 // pred_fallthru
      _
    %v218 = vld [vmem:[#allocation14] sm:$0xff]
    %v219 = vld [vmem:[#allocation14 + $0x8] sm:$0xff]
    %v220 = vld [vmem:[#allocation14 + $0x10] sm:$0xff]
    %v221 = vld [vmem:[#allocation14 + $0x18] sm:$0xff]
    %v222 = vld [vmem:[#allocation14 + $0x20] sm:$0xff]
    %v223 = vld [vmem:[#allocation14 + $0x28] sm:$0xff]
    %v224 = vld [vmem:[#allocation14 + $0x30] sm:$0xff]
    %v225 = vld [vmem:[#allocation14 + $0x38] sm:$0xff]
    %v226 = vadd.f32 %v218, %v219
    %227 = vadd.xlane.f32.xlu0 %v226
    %v228 = vpop.xlane.xlu0 %227
    %v229 = vadd.f32 %v220, %v221
    %230 = vadd.xlane.f32.xlu0 %v229
    %v231 = vpop.xlane.xlu0 %230
    %v232 = vadd.f32 %v222, %v223
    %233 = vadd.xlane.f32.xlu0 %v232
    %v234 = vpop.xlane.xlu0 %233
    %v235 = vadd.f32 %v224, %v225
    %236 = vadd.xlane.f32.xlu0 %v235
    %v237 = vpop.xlane.xlu0 %236
    %v238 = vld [vmem:[#allocation2] sm:$0x1]
    %v239 = vld [vmem:[#allocation8] sm:$0xff]
    %v240 = vld [vmem:[#allocation8 + $0x8] sm:$0xff]
    %v241 = vld [vmem:[#allocation8 + $0x10] sm:$0xff]
    %v242 = vld [vmem:[#allocation8 + $0x18] sm:$0xff]
    %v243 = vld [vmem:[#allocation8 + $0x20] sm:$0xff]
    %v244 = vld [vmem:[#allocation8 + $0x28] sm:$0xff]
    %v245 = vld [vmem:[#allocation8 + $0x30] sm:$0xff]
    %v246 = vld [vmem:[#allocation8 + $0x38] sm:$0xff]
    %v247 = vmax.f32 %v239, %v240
    %248 = vmax.xlane.f32.xlu0 %v247
    %v249 = vpop.xlane.xlu0 %248
    %v250 = vmax.f32 %v241, %v242
    %251 = vmax.xlane.f32.xlu0 %v250
    %v252 = vpop.xlane.xlu0 %251
    %v253 = vmax.f32 %v243, %v244
    %254 = vmax.xlane.f32.xlu0 %v253
    %v255 = vpop.xlane.xlu0 %254
    %v256 = vmax.f32 %v245, %v246
    %257 = vmax.xlane.f32.xlu0 %v256
    %v258 = vpop.xlane.xlu0 %257
    %v259 = vsub.f32 %v239, %v249
    %v260 = vsub.f32 %v240, %v249
    %v261 = vsub.f32 %v241, %v252
    %v262 = vsub.f32 %v242, %v252
    %v263 = vsub.f32 %v243, %v255
    %v264 = vsub.f32 %v244, %v255
    %v265 = vsub.f32 %v245, %v258
    %v266 = vsub.f32 %v246, %v258
    %v267 = vmul.f32 %v259, 1.442695
    %v268 = vpow.pop %v267
    %v269 = vmul.f32 %v260, 1.442695
    %v270 = vpow.pop %v269
    %v271 = vmul.f32 %v261, 1.442695
    %v272 = vpow.pop %v271
    %v273 = vmul.f32 %v262, 1.442695
    %v274 = vpow.pop %v273
    %v275 = vmul.f32 %v263, 1.442695
    %v276 = vpow.pop %v275
    %v277 = vmul.f32 %v264, 1.442695
    %v278 = vpow.pop %v277
    %v279 = vmul.f32 %v265, 1.442695
    %v280 = vpow.pop %v279
    %v281 = vmul.f32 %v266, 1.442695
    %v282 = vpow.pop %v281
    %v283 = vadd.f32 %v268, %v270
    %284 = vadd.xlane.f32.xlu0 %v283
    %v285 = vpop.xlane.xlu0 %284
    %v286 = vadd.f32 %v272, %v274
    %287 = vadd.xlane.f32.xlu0 %v286
    %v288 = vpop.xlane.xlu0 %287
    %v289 = vadd.f32 %v276, %v278
    %290 = vadd.xlane.f32.xlu0 %v289
    %v291 = vpop.xlane.xlu0 %290
    %v292 = vadd.f32 %v280, %v282
    %293 = vadd.xlane.f32.xlu0 %v292
    %v294 = vpop.xlane.xlu0 %293
    %v295 = vlog2.pop %v285
    %v296 = vmul.f32 %v295, 0.6931472
    %v297 = vlog2.pop %v288
    %v298 = vmul.f32 %v297, 0.6931472
    %v299 = vlog2.pop %v291
    %v300 = vmul.f32 %v299, 0.6931472
    %v301 = vlog2.pop %v294
    %v302 = vmul.f32 %v301, 0.6931472
    %v303 = vmul.f32 %v259, %v218
    %v304 = vmul.f32 %v260, %v219
    %v305 = vmul.f32 %v261, %v220
    %v306 = vmul.f32 %v262, %v221
    %v307 = vmul.f32 %v263, %v222
    %v308 = vmul.f32 %v264, %v223
    %v309 = vmul.f32 %v265, %v224
    %v310 = vmul.f32 %v266, %v225
    %v311 = vadd.f32 %v303, %v304
    %312 = vadd.xlane.f32.xlu0 %v311
    %v313 = vpop.xlane.xlu0 %312
    %v314 = vadd.f32 %v305, %v306
    %315 = vadd.xlane.f32.xlu0 %v314
    %v316 = vpop.xlane.xlu0 %315
    %v317 = vadd.f32 %v307, %v308
    %318 = vadd.xlane.f32.xlu0 %v317
    %v319 = vpop.xlane.xlu0 %318
    %v320 = vadd.f32 %v309, %v310
    %321 = vadd.xlane.f32.xlu0 %v320
    %v322 = vpop.xlane.xlu0 %321
    %v323 = vmul.f32 %v296, %v228
    %v324 = vmul.f32 %v298, %v231
    %v325 = vmul.f32 %v300, %v234
    %v326 = vmul.f32 %v302, %v237
    %v327 = vsub.f32 %v313, %v323
    %v328 = vsub.f32 %v316, %v324
    %v329 = vsub.f32 %v319, %v325
    %v330 = vsub.f32 %v322, %v326
    %v331 = vadd.f32 %v327, %v328
    %v332 = vadd.f32 %v331, %v329
    %v333 = vadd.f32 %v332, %v330
    %v334 = vrot.slane %v333, 4
    %v335 = vadd.f32 %v333, %v334
    %v336 = vrot.slane %v335, 2
    %v337 = vadd.f32 %v335, %v336
    %v338 = vrot.slane %v337, 1
    %v339 = vadd.f32 %v337, %v338
    %v340 = vadd.f32 %v238, %v339
    %vm341 = vcmask 0
    %342 = vst.msk [vmem:[#allocation2] sm:$0x1] %vm341, %v340
    %v343 = vld [vmem:[#allocation3] sm:$0x1]
    %v344 = vld [vmem:[#allocation11] sm:$0xff]
    %v345 = vld [vmem:[#allocation11 + $0x8] sm:$0xff]
    %v346 = vld [vmem:[#allocation11 + $0x10] sm:$0xff]
    %v347 = vld [vmem:[#allocation11 + $0x18] sm:$0xff]
    %v348 = vld [vmem:[#allocation11 + $0x20] sm:$0xff]
    %v349 = vld [vmem:[#allocation11 + $0x28] sm:$0xff]
    %v350 = vld [vmem:[#allocation11 + $0x30] sm:$0xff]
    %v351 = vld [vmem:[#allocation11 + $0x38] sm:$0xff]
    %v352 = vmax.f32 %v344, %v345
    %353 = vmax.xlane.f32.xlu0 %v352
    %v354 = vpop.xlane.xlu0 %353
    %v355 = vmax.f32 %v346, %v347
    %356 = vmax.xlane.f32.xlu0 %v355
    %v357 = vpop.xlane.xlu0 %356
    %v358 = vmax.f32 %v348, %v349
    %359 = vmax.xlane.f32.xlu0 %v358
    %v360 = vpop.xlane.xlu0 %359
    %v361 = vmax.f32 %v350, %v351
    %362 = vmax.xlane.f32.xlu0 %v361
    %v363 = vpop.xlane.xlu0 %362
    %v364 = vsub.f32 %v344, %v354
    %v365 = vsub.f32 %v345, %v354
    %v366 = vsub.f32 %v346, %v357
    %v367 = vsub.f32 %v347, %v357
    %v368 = vsub.f32 %v348, %v360
    %v369 = vsub.f32 %v349, %v360
    %v370 = vsub.f32 %v350, %v363
    %v371 = vsub.f32 %v351, %v363
    %v372 = vmul.f32 %v364, 1.442695
    %v373 = vpow.pop %v372
    %v374 = vmul.f32 %v365, 1.442695
    %v375 = vpow.pop %v374
    %v376 = vmul.f32 %v366, 1.442695
    %v377 = vpow.pop %v376
    %v378 = vmul.f32 %v367, 1.442695
    %v379 = vpow.pop %v378
    %v380 = vmul.f32 %v368, 1.442695
    %v381 = vpow.pop %v380
    %v382 = vmul.f32 %v369, 1.442695
    %v383 = vpow.pop %v382
    %v384 = vmul.f32 %v370, 1.442695
    %v385 = vpow.pop %v384
    %v386 = vmul.f32 %v371, 1.442695
    %v387 = vpow.pop %v386
    %v388 = vadd.f32 %v373, %v375
    %389 = vadd.xlane.f32.xlu0 %v388
    %v390 = vpop.xlane.xlu0 %389
    %v391 = vadd.f32 %v377, %v379
    %392 = vadd.xlane.f32.xlu0 %v391
    %v393 = vpop.xlane.xlu0 %392
    %v394 = vadd.f32 %v381, %v383
    %395 = vadd.xlane.f32.xlu0 %v394
    %v396 = vpop.xlane.xlu0 %395
    %v397 = vadd.f32 %v385, %v387
    %398 = vadd.xlane.f32.xlu0 %v397
    %v399 = vpop.xlane.xlu0 %398
    %v400 = vlog2.pop %v390
    %v401 = vmul.f32 %v400, 0.6931472
    %v402 = vlog2.pop %v393
    %v403 = vmul.f32 %v402, 0.6931472
    %v404 = vlog2.pop %v396
    %v405 = vmul.f32 %v404, 0.6931472
    %v406 = vlog2.pop %v399
    %v407 = vmul.f32 %v406, 0.6931472
    %v408 = vmul.f32 %v364, %v218
    %v409 = vmul.f32 %v365, %v219
    %v410 = vmul.f32 %v366, %v220
    %v411 = vmul.f32 %v367, %v221
    %v412 = vmul.f32 %v368, %v222
    %v413 = vmul.f32 %v369, %v223
    %v414 = vmul.f32 %v370, %v224
    %v415 = vmul.f32 %v371, %v225
    %v416 = vadd.f32 %v408, %v409
    %417 = vadd.xlane.f32.xlu0 %v416
    %v418 = vpop.xlane.xlu0 %417
    %v419 = vadd.f32 %v410, %v411
    %420 = vadd.xlane.f32.xlu0 %v419
    %v421 = vpop.xlane.xlu0 %420
    %v422 = vadd.f32 %v412, %v413
    %423 = vadd.xlane.f32.xlu0 %v422
    %v424 = vpop.xlane.xlu0 %423
    %v425 = vadd.f32 %v414, %v415
    %426 = vadd.xlane.f32.xlu0 %v425
    %v427 = vpop.xlane.xlu0 %426
    %v428 = vmul.f32 %v401, %v228
    %v429 = vmul.f32 %v403, %v231
    %v430 = vmul.f32 %v405, %v234
    %v431 = vmul.f32 %v407, %v237
    %v432 = vsub.f32 %v418, %v428
    %v433 = vsub.f32 %v421, %v429
    %v434 = vsub.f32 %v424, %v430
    %v435 = vsub.f32 %v427, %v431
    %v436 = vadd.f32 %v432, %v433
    %v437 = vadd.f32 %v436, %v434
    %v438 = vadd.f32 %v437, %v435
    %v439 = vrot.slane %v438, 4
    %v440 = vadd.f32 %v438, %v439
    %v441 = vrot.slane %v440, 2
    %v442 = vadd.f32 %v440, %v441
    %v443 = vrot.slane %v442, 1
    %v444 = vadd.f32 %v442, %v443
    %v445 = vadd.f32 %v343, %v444
    %446 = vst.msk [vmem:[#allocation3] sm:$0x1] %vm341, %v445
    %v447 = vld [vmem:[#allocation4] sm:$0x1]
    %v448 = vld [vmem:[#allocation13] sm:$0xff]
    %v449 = vld [vmem:[#allocation13 + $0x8] sm:$0xff]
    %v450 = vld [vmem:[#allocation13 + $0x10] sm:$0xff]
    %v451 = vld [vmem:[#allocation13 + $0x18] sm:$0xff]
    %v452 = vld [vmem:[#allocation13 + $0x20] sm:$0xff]
    %v453 = vld [vmem:[#allocation13 + $0x28] sm:$0xff]
    %v454 = vld [vmem:[#allocation13 + $0x30] sm:$0xff]
    %v455 = vld [vmem:[#allocation13 + $0x38] sm:$0xff]
    %v456 = vmax.f32 %v448, %v449
    %457 = vmax.xlane.f32.xlu0 %v456
    %v458 = vpop.xlane.xlu0 %457
    %v459 = vmax.f32 %v450, %v451
    %460 = vmax.xlane.f32.xlu0 %v459
    %v461 = vpop.xlane.xlu0 %460
    %v462 = vmax.f32 %v452, %v453
    %463 = vmax.xlane.f32.xlu0 %v462
    %v464 = vpop.xlane.xlu0 %463
    %v465 = vmax.f32 %v454, %v455
    %466 = vmax.xlane.f32.xlu0 %v465
    %v467 = vpop.xlane.xlu0 %466
    %v468 = vsub.f32 %v448, %v458
    %v469 = vsub.f32 %v449, %v458
    %v470 = vsub.f32 %v450, %v461
    %v471 = vsub.f32 %v451, %v461
    %v472 = vsub.f32 %v452, %v464
    %v473 = vsub.f32 %v453, %v464
    %v474 = vsub.f32 %v454, %v467
    %v475 = vsub.f32 %v455, %v467
    %v476 = vmul.f32 %v468, 1.442695
    %v477 = vpow.pop %v476
    %v478 = vmul.f32 %v469, 1.442695
    %v479 = vpow.pop %v478
    %v480 = vmul.f32 %v470, 1.442695
    %v481 = vpow.pop %v480
    %v482 = vmul.f32 %v471, 1.442695
    %v483 = vpow.pop %v482
    %v484 = vmul.f32 %v472, 1.442695
    %v485 = vpow.pop %v484
    %v486 = vmul.f32 %v473, 1.442695
    %v487 = vpow.pop %v486
    %v488 = vmul.f32 %v474, 1.442695
    %v489 = vpow.pop %v488
    %v490 = vmul.f32 %v475, 1.442695
    %v491 = vpow.pop %v490
    %v492 = vadd.f32 %v477, %v479
    %493 = vadd.xlane.f32.xlu0 %v492
    %v494 = vpop.xlane.xlu0 %493
    %v495 = vadd.f32 %v481, %v483
    %496 = vadd.xlane.f32.xlu0 %v495
    %v497 = vpop.xlane.xlu0 %496
    %v498 = vadd.f32 %v485, %v487
    %499 = vadd.xlane.f32.xlu0 %v498
    %v500 = vpop.xlane.xlu0 %499
    %v501 = vadd.f32 %v489, %v491
    %502 = vadd.xlane.f32.xlu0 %v501
    %v503 = vpop.xlane.xlu0 %502
    %v504 = vlog2.pop %v494
    %v505 = vmul.f32 %v504, 0.6931472
    %v506 = vlog2.pop %v497
    %v507 = vmul.f32 %v506, 0.6931472
    %v508 = vlog2.pop %v500
    %v509 = vmul.f32 %v508, 0.6931472
    %v510 = vlog2.pop %v503
    %v511 = vmul.f32 %v510, 0.6931472
    %v512 = vmul.f32 %v468, %v218
    %v513 = vmul.f32 %v469, %v219
    %v514 = vmul.f32 %v470, %v220
    %v515 = vmul.f32 %v471, %v221
    %v516 = vmul.f32 %v472, %v222
    %v517 = vmul.f32 %v473, %v223
    %v518 = vmul.f32 %v474, %v224
    %v519 = vmul.f32 %v475, %v225
    %v520 = vadd.f32 %v512, %v513
    %521 = vadd.xlane.f32.xlu0 %v520
    %v522 = vpop.xlane.xlu0 %521
    %v523 = vadd.f32 %v514, %v515
    %524 = vadd.xlane.f32.xlu0 %v523
    %v525 = vpop.xlane.xlu0 %524
    %v526 = vadd.f32 %v516, %v517
    %527 = vadd.xlane.f32.xlu0 %v526
    %v528 = vpop.xlane.xlu0 %527
    %v529 = vadd.f32 %v518, %v519
    %530 = vadd.xlane.f32.xlu0 %v529
    %v531 = vpop.xlane.xlu0 %530
    %v532 = vmul.f32 %v505, %v228
    %v533 = vmul.f32 %v507, %v231
    %v534 = vmul.f32 %v509, %v234
    %v535 = vmul.f32 %v511, %v237
    %v536 = vsub.f32 %v522, %v532
    %v537 = vsub.f32 %v525, %v533
    %v538 = vsub.f32 %v528, %v534
    %v539 = vsub.f32 %v531, %v535
    %v540 = vadd.f32 %v536, %v537
    %v541 = vadd.f32 %v540, %v538
    %v542 = vadd.f32 %v541, %v539
    %v543 = vrot.slane %v542, 4
    %v544 = vadd.f32 %v542, %v543
    %v545 = vrot.slane %v544, 2
    %v546 = vadd.f32 %v544, %v545
    %v547 = vrot.slane %v546, 1
    %v548 = vadd.f32 %v546, %v547
    %v549 = vadd.f32 %v447, %v548
    %550 = vst.msk [vmem:[#allocation4] sm:$0x1] %vm341, %v549
    %v551 = vld [vmem:[#allocation16] sm:$0xff]
    %v552 = vld [vmem:[#allocation16 + $0x8] sm:$0xff]
    %v553 = vld [vmem:[#allocation16 + $0x10] sm:$0xff]
    %v554 = vld [vmem:[#allocation16 + $0x18] sm:$0xff]
    %v555 = vld [vmem:[#allocation17] sm:$0xff]
    %v556 = vld [vmem:[#allocation17 + $0x8] sm:$0xff]
    %v557 = vld [vmem:[#allocation17 + $0x10] sm:$0xff]
    %v558 = vld [vmem:[#allocation17 + $0x18] sm:$0xff]
    %v559 = vld [vmem:[#allocation19] sm:$0xff]
    %v560 = vld [vmem:[#allocation19 + $0x8] sm:$0xff]
    %v561 = vld [vmem:[#allocation19 + $0x10] sm:$0xff]
    %v562 = vld [vmem:[#allocation19 + $0x18] sm:$0xff]
    %v563 = vld [vmem:[#allocation20] sm:$0xff]
    %v564 = vld [vmem:[#allocation20 + $0x8] sm:$0xff]
    %v565 = vld [vmem:[#allocation20 + $0x10] sm:$0xff]
    %v566 = vld [vmem:[#allocation20 + $0x18] sm:$0xff]
    %v567 = vmul.f32 %v555, 0.5
    %v568 = vmul.f32 %v556, 0.5
    %v569 = vmul.f32 %v557, 0.5
    %v570 = vmul.f32 %v558, 0.5
    %v571 = vmul.f32 %v567, 1.442695
    %v572 = vpow.pop %v571
    %v573 = vmul.f32 %v568, 1.442695
    %v574 = vpow.pop %v573
    %v575 = vmul.f32 %v569, 1.442695
    %v576 = vpow.pop %v575
    %v577 = vmul.f32 %v570, 1.442695
    %v578 = vpow.pop %v577
    %v579 = vmul.f32 %v563, 0.5
    %v580 = vmul.f32 %v564, 0.5
    %v581 = vmul.f32 %v565, 0.5
    %v582 = vmul.f32 %v566, 0.5
    %v583 = vmul.f32 %v579, 1.442695
    %v584 = vpow.pop %v583
    %v585 = vmul.f32 %v580, 1.442695
    %v586 = vpow.pop %v585
    %v587 = vmul.f32 %v581, 1.442695
    %v588 = vpow.pop %v587
    %v589 = vmul.f32 %v582, 1.442695
    %v590 = vpow.pop %v589
    %v591 = vmul.f32 %v572, %v572
    %v592 = vmul.f32 %v574, %v574
    %v593 = vmul.f32 %v576, %v576
    %v594 = vmul.f32 %v578, %v578
    %v595 = vmul.f32 %v584, %v584
    %v596 = vmul.f32 %v586, %v586
    %v597 = vmul.f32 %v588, %v588
    %v598 = vmul.f32 %v590, %v590
    %v599 = vld [vmem:[#allocation5] sm:$0x1]
    %v600 = vadd.f32 %v555, 1.0
    %v601 = vadd.f32 %v556, 1.0
    %v602 = vadd.f32 %v557, 1.0
    %v603 = vadd.f32 %v558, 1.0
    %v604 = vmul.f32 %v551, %v551
    %v605 = vmul.f32 %v552, %v552
    %v606 = vmul.f32 %v553, %v553
    %v607 = vmul.f32 %v554, %v554
    %v608 = vsub.f32 %v600, %v604
    %v609 = vsub.f32 %v601, %v605
    %v610 = vsub.f32 %v602, %v606
    %v611 = vsub.f32 %v603, %v607
    %v612 = vsub.f32 %v608, %v591
    %v613 = vsub.f32 %v609, %v592
    %v614 = vsub.f32 %v610, %v593
    %v615 = vsub.f32 %v611, %v594
    %616 = vadd.xlane.f32.xlu0 %v612
    %v617 = vpop.xlane.xlu0 %616
    %618 = vadd.xlane.f32.xlu0 %v613
    %v619 = vpop.xlane.xlu0 %618
    %620 = vadd.xlane.f32.xlu0 %v614
    %v621 = vpop.xlane.xlu0 %620
    %622 = vadd.xlane.f32.xlu0 %v615
    %v623 = vpop.xlane.xlu0 %622
    %v624 = vadd.f32 %v617, %v619
    %v625 = vadd.f32 %v624, %v621
    %v626 = vadd.f32 %v625, %v623
    %v627 = vrot.slane %v626, 4
    %v628 = vadd.f32 %v626, %v627
    %v629 = vrot.slane %v628, 2
    %v630 = vadd.f32 %v628, %v629
    %v631 = vrot.slane %v630, 1
    %v632 = vadd.f32 %v630, %v631
    %v633 = vadd.f32 %v599, %v632
    %634 = vst.msk [vmem:[#allocation5] sm:$0x1] %vm341, %v633
    %v635 = vld [vmem:[#allocation6] sm:$0x1]
    %v636 = vadd.f32 %v563, 1.0
    %v637 = vadd.f32 %v564, 1.0
    %v638 = vadd.f32 %v565, 1.0
    %v639 = vadd.f32 %v566, 1.0
    %v640 = vmul.f32 %v559, %v559
    %v641 = vmul.f32 %v560, %v560
    %v642 = vmul.f32 %v561, %v561
    %v643 = vmul.f32 %v562, %v562
    %v644 = vsub.f32 %v636, %v640
    %v645 = vsub.f32 %v637, %v641
    %v646 = vsub.f32 %v638, %v642
    %v647 = vsub.f32 %v639, %v643
    %v648 = vsub.f32 %v644, %v595
    %v649 = vsub.f32 %v645, %v596
    %v650 = vsub.f32 %v646, %v597
    %v651 = vsub.f32 %v647, %v598
    %652 = vadd.xlane.f32.xlu0 %v648
    %v653 = vpop.xlane.xlu0 %652
    %654 = vadd.xlane.f32.xlu0 %v649
    %v655 = vpop.xlane.xlu0 %654
    %656 = vadd.xlane.f32.xlu0 %v650
    %v657 = vpop.xlane.xlu0 %656
    %658 = vadd.xlane.f32.xlu0 %v651
    %v659 = vpop.xlane.xlu0 %658
    %v660 = vadd.f32 %v653, %v655
    %v661 = vadd.f32 %v660, %v657
    %v662 = vadd.f32 %v661, %v659
    %v663 = vrot.slane %v662, 4
    %v664 = vadd.f32 %v662, %v663
    %v665 = vrot.slane %v664, 2
    %v666 = vadd.f32 %v664, %v665
    %v667 = vrot.slane %v666, 1
    %v668 = vadd.f32 %v666, %v667
    %v669 = vadd.f32 %v635, %v668
    %670 = vst.msk [vmem:[#allocation6] sm:$0x1] %vm341, %v669
    %v671 = vsub.f32 %v551, %v559
    %v672 = vsub.f32 %v552, %v560
    %v673 = vsub.f32 %v553, %v561
    %v674 = vsub.f32 %v554, %v562
    %v675 = vsub.f32 %v572, %v584
    %v676 = vsub.f32 %v574, %v586
    %v677 = vsub.f32 %v576, %v588
    %v678 = vsub.f32 %v578, %v590
    %v679 = vld [vmem:[#allocation7] sm:$0x1]
    %v680 = vmul.f32 %v671, %v671
    %v681 = vmul.f32 %v672, %v672
    %v682 = vmul.f32 %v673, %v673
    %v683 = vmul.f32 %v674, %v674
    %v684 = vmul.f32 %v675, %v675
    %v685 = vmul.f32 %v676, %v676
    %v686 = vmul.f32 %v677, %v677
    %v687 = vmul.f32 %v678, %v678
    %v688 = vadd.f32 %v680, %v684
    %v689 = vadd.f32 %v681, %v685
    %v690 = vadd.f32 %v682, %v686
    %v691 = vadd.f32 %v683, %v687
    %692 = vadd.xlane.f32.xlu0 %v688
    %v693 = vpop.xlane.xlu0 %692
    %694 = vadd.xlane.f32.xlu0 %v689
    %v695 = vpop.xlane.xlu0 %694
    %696 = vadd.xlane.f32.xlu0 %v690
    %v697 = vpop.xlane.xlu0 %696
    %698 = vadd.xlane.f32.xlu0 %v691
    %v699 = vpop.xlane.xlu0 %698
    %v700 = vadd.f32 %v693, %v695
    %v701 = vadd.f32 %v700, %v697
    %v702 = vadd.f32 %v701, %v699
    %v703 = vrot.slane %v702, 4
    %v704 = vadd.f32 %v702, %v703
    %v705 = vrot.slane %v704, 2
    %v706 = vadd.f32 %v704, %v705
    %v707 = vrot.slane %v706, 1
    %v708 = vadd.f32 %v706, %v707
    %v709 = vadd.f32 %v679, %v708
    %710 = vst.msk [vmem:[#allocation7] sm:$0x1] %vm341, %v709
    // Predicated region
    $region70: #{tpu_custom_call.1} parent=1 // pred_check
      %p711 = pneg %p207
    $region71: #{tpu_custom_call.1} parent=1 // pred_check_branch
      %713 = sbr.rel (%p711) target = $region73
    $region72: #{tpu_custom_call.1} parent=1 // pred_region
      %v714 = vld [vmem:[#allocation2] sm:$0x1]
      %v715 = vsub.f32 0.0, %v714
      %v716 = vmul.f32 %v715, 0.00015024039
      %v717 = vld [vmem:[#allocation3] sm:$0x1]
      %v718 = vsub.f32 0.0, %v717
      %v719 = vmul.f32 %v718, 0.00015024039
      %v720 = vld [vmem:[#allocation4] sm:$0x1]
      %v721 = vsub.f32 0.0, %v720
      %v722 = vmul.f32 %v721, 0.00015024039
      %v723 = vld [vmem:[#allocation5] sm:$0x1]
      %v724 = vmul.f32 %v723, -0.00015024039
      %v725 = vld [vmem:[#allocation6] sm:$0x1]
      %v726 = vmul.f32 %v725, -0.00015024039
      %v727 = vld [vmem:[#allocation7] sm:$0x1]
      %v728 = vmul.f32 %v727, 0.03846154
      %v729 = vlaneseq
      %v730 = vshrl.u32 %v729, 7
      %vm731 = vcmp.eq.s32.totalorder %v730, 0
      %v733 = vperm.slane %v716, 0
      %734 = vset.pattern.permute.xlu0 0
      %735 = vperm.xlu0 %734, %v733
      %v736 = vpop.permute.xlu0 %735
      %v738 = vsel %vm731, %v736, 0.0
      %vm739 = vcmp.eq.s32.totalorder %v730, 1
      %v741 = vperm.slane %v719, 0
      %742 = vset.pattern.permute.xlu0 0
      %743 = vperm.xlu0 %742, %v741
      %v744 = vpop.permute.xlu0 %743
      %v746 = vsel %vm739, %v744, 0.0
      %v747 = vadd.f32 %v738, %v746
      %vm748 = vcmp.eq.s32.totalorder %v730, 2
      %v750 = vperm.slane %v722, 0
      %751 = vset.pattern.permute.xlu0 0
      %752 = vperm.xlu0 %751, %v750
      %v753 = vpop.permute.xlu0 %752
      %v755 = vsel %vm748, %v753, 0.0
      %v756 = vadd.f32 %v747, %v755
      %vm757 = vcmp.eq.s32.totalorder %v730, 3
      %v759 = vperm.slane %v724, 0
      %760 = vset.pattern.permute.xlu0 0
      %761 = vperm.xlu0 %760, %v759
      %v762 = vpop.permute.xlu0 %761
      %v764 = vsel %vm757, %v762, 0.0
      %v765 = vadd.f32 %v756, %v764
      %vm766 = vcmp.eq.s32.totalorder %v730, 4
      %v768 = vperm.slane %v726, 0
      %769 = vset.pattern.permute.xlu0 0
      %770 = vperm.xlu0 %769, %v768
      %v771 = vpop.permute.xlu0 %770
      %v773 = vsel %vm766, %v771, 0.0
      %v774 = vadd.f32 %v765, %v773
      %vm775 = vcmp.eq.s32.totalorder %v730, 5
      %v777 = vperm.slane %v728, 0
      %778 = vset.pattern.permute.xlu0 0
      %779 = vperm.xlu0 %778, %v777
      %v780 = vpop.permute.xlu0 %779
      %v782 = vsel %vm775, %v780, 0.0
      %v783 = vadd.f32 %v774, %v782
      %784 = vst [vmem:[#allocation22] sm:$0xff] %v783
    $region73: #{tpu_custom_call.1} parent=1 // pred_fallthru
      _
    // Predicated region
    $region74: #{tpu_custom_call.1} parent=1 // pred_check
      _
    $region75: #{tpu_custom_call.1} parent=1 // pred_check_branch
      %786 = sbr.rel (0) target = $region77
    $region76: #{tpu_custom_call.1} parent=1 // pred_region
      %788 = vsyncadd [#allocation10], 0
      %s790 = sshll.u32 [#allocation22], 4
      %s791 = int_to_ptr.vmem [resolvable:$true] %s790
      %s792 = sshll.u32 %s8, 4
      %s793 = int_to_ptr.hbm [resolvable:$true] %s792
      %795 = dma.vmem_to_hbm [thread:$0]  %s791, 128, %s793, [#allocation10]
    $region77: #{tpu_custom_call.1} parent=1 // pred_fallthru
      _
    // Predicated region
    $region78: #{tpu_custom_call.1} parent=1 // pred_check
      _
    $region79: #{tpu_custom_call.1} parent=1 // pred_check_branch
      %797 = sbr.rel (0) target = $region81
    $region80: #{tpu_custom_call.1} parent=1 // pred_region
      %799 = dma.done [#allocation10], 128
    $region81: #{tpu_custom_call.1} parent=1 // pred_fallthru
      _
    %800 = vsyncpa [#allocation9], 1
    %801 = vsyncpa [#allocation12], 1
    %802 = vsyncpa [#allocation15], 1
    %803 = vsyncpa [#allocation18], 1
    %804 = vsyncpa [#allocation21], 1
    %805 = vsyncpa [#allocation10], 1

</llo_original>
